<compile_context>
chip_gen: v6e
topology: v6e:2x2x1
jax: 0.10.0
libtpu: 0.0.40
codegen_flags: <defaults>
</compile_context>

<pallas_src>
import jax
import jax.numpy as jnp
from jax import lax
from jax.experimental import pallas as pl
from jax.experimental.pallas import tpu as pltpu  # noqa: F401  (TPU backend)

N = 16        # in_features == out_features == batch rows in this module
K2 = 2 * N    # fused contraction dim (w1 and w2 K-concatenated)

# Contract dim 1 of A[m, k] with dim 1 of W[n, k]  ->  [m, n]  (i.e. A @ W.T,
# expressed without materializing a transpose).
_CONTRACT_LAST = (((1,), (1,)), ((), ()))


def _fused_linear_sum_kernel(x1_ref, x2_ref, x3_ref, x4_ref, wc_ref, b_ref, o_ref):
    # Fold the three linear1 inputs with cheap VPU adds (one vreg each).
    xs = x1_ref[...] + x2_ref[...] + x4_ref[...]

    # Lane-concat to (N, 2N): [xs | x3]; pairs with the K-concatenated weight.
    a = jnp.concatenate([xs, x3_ref[...]], axis=1)

    # Single MXU push, K = 32, f32 accumulation; weight stays in PyTorch
    # [out, in(+in)] layout and the transpose lives in dimension_numbers.
    acc = lax.dot_general(a, wc_ref[...], dimension_numbers=_CONTRACT_LAST,
                          preferred_element_type=jnp.float32)

    # Pre-folded bias (1, N) broadcasts over rows.
    o_ref[...] = (acc + b_ref[...]).astype(o_ref.dtype)


def prepare_params(w1, b1, w2, b2):
    """One-time (init) parameter fold.

    w1, w2 are PyTorch-convention [out_features, in_features]; b1, b2 are 1-D.
    Returns the K-concatenated weight [N, 2N] and combined bias (3*b1 + b2)
    shaped (1, N).  Run this once at init, not per call.
    """
    wc = jnp.concatenate([w1, w2], axis=1)        # [16, 32]
    bias = (3.0 * b1 + b2).reshape(1, N)          # [1, 16]
    return wc, bias


def mm_plus_mm(x1, x2, x3, x4, wc, bias):
    """Fused forward: (x1 + x2 + x4) @ w1.T + x3 @ w2.T + (3*b1 + b2)."""
    full = pl.BlockSpec((N, N), lambda: (0, 0))
    wspec = pl.BlockSpec((N, K2), lambda: (0, 0))
    bspec = pl.BlockSpec((1, N), lambda: (0, 0))

    cost = pl.CostEstimate(
        flops=2 * N * K2 * N,                                   # one fused matmul
        transcendentals=0,
        bytes_accessed=(4 * N * N + N * K2 + N + N * N) * 4,    # ins + W + b + out
    )

    return pl.pallas_call(
        _fused_linear_sum_kernel,
        out_shape=jax.ShapeDtypeStruct((N, N), jnp.float32),
        in_specs=[full, full, full, full, wspec, bspec],
        out_specs=full,
        cost_estimate=cost,
    )(x1, x2, x3, x4, wc, bias)


if __name__ == "__main__":
    key = jax.random.PRNGKey(0)
    k1, k2, k3, k4, kw1, kb1, kw2, kb2 = jax.random.split(key, 8)

    # Inputs (same shapes as the PyTorch script: 16x16 each).
    input1 = jax.random.normal(k1, (N, N), jnp.float32)
    input2 = jax.random.normal(k2, (N, N), jnp.float32)
    input3 = jax.random.normal(k3, (N, N), jnp.float32)
    input4 = jax.random.normal(k4, (N, N), jnp.float32)

    # Deterministic parameter init mimicking nn.Linear (uniform +/- 1/sqrt(fan_in)).
    bound = 1.0 / jnp.sqrt(jnp.float32(N))
    w1 = jax.random.uniform(kw1, (N, N), jnp.float32, -bound, bound)  # [out, in]
    b1 = jax.random.uniform(kb1, (N,), jnp.float32, -bound, bound)
    w2 = jax.random.uniform(kw2, (N, N), jnp.float32, -bound, bound)
    b2 = jax.random.uniform(kb2, (N,), jnp.float32, -bound, bound)

    # One-time parameter fold (init-time, not part of the per-call path).
    wc, bias = jax.block_until_ready(prepare_params(w1, b1, w2, b2))

    out = mm_plus_mm(input1, input2, input3, input4, wc, bias)
    out = jax.block_until_ready(out)

    # Reference check in plain JAX (exactly the module's forward).
    ref = ((input1 @ w1.T + b1) + (input2 @ w1.T + b1)
           + (input3 @ w2.T + b2) + (input4 @ w1.T + b1))
    assert jnp.allclose(out, ref, atol=1e-4, rtol=1e-4), "mismatch vs reference"

    print("KERNEL_OK")
</pallas_src>

<mosaic_0001>
module attributes {stable_mosaic.version = 11 : i64} {
  func.func @_fused_linear_sum_kernel(%arg0: memref<16x16xf32, #tpu.memory_space<vmem>>, %arg1: memref<16x16xf32, #tpu.memory_space<vmem>>, %arg2: memref<16x16xf32, #tpu.memory_space<vmem>>, %arg3: memref<16x16xf32, #tpu.memory_space<vmem>>, %arg4: memref<16x32xf32, #tpu.memory_space<vmem>>, %arg5: memref<1x16xf32, #tpu.memory_space<vmem>>, %arg6: memref<16x16xf32, #tpu.memory_space<vmem>>) attributes {dimension_semantics = [], scalar_prefetch = 0 : i64, scratch_operands = 0 : i64, tpu.core_type = #tpu.core_type<tc>} {
    %c0 = arith.constant 0 : index
    %c0_0 = arith.constant 0 : index
    %0 = vector.load %arg0[%c0, %c0_0] : memref<16x16xf32, #tpu.memory_space<vmem>>, vector<16x16xf32>
    %c0_1 = arith.constant 0 : index
    %c0_2 = arith.constant 0 : index
    %1 = vector.load %arg1[%c0_1, %c0_2] : memref<16x16xf32, #tpu.memory_space<vmem>>, vector<16x16xf32>
    %2 = arith.addf %0, %1 : vector<16x16xf32>
    %c0_3 = arith.constant 0 : index
    %c0_4 = arith.constant 0 : index
    %3 = vector.load %arg3[%c0_3, %c0_4] : memref<16x16xf32, #tpu.memory_space<vmem>>, vector<16x16xf32>
    %4 = arith.addf %2, %3 : vector<16x16xf32>
    %c0_5 = arith.constant 0 : index
    %c0_6 = arith.constant 0 : index
    %5 = vector.load %arg2[%c0_5, %c0_6] : memref<16x16xf32, #tpu.memory_space<vmem>>, vector<16x16xf32>
    %6 = tpu.concatenate %4, %5 in 1 : vector<16x16xf32>, vector<16x16xf32> -> vector<16x32xf32>
    %c0_7 = arith.constant 0 : index
    %c0_8 = arith.constant 0 : index
    %7 = vector.load %arg4[%c0_7, %c0_8] : memref<16x32xf32, #tpu.memory_space<vmem>>, vector<16x32xf32>
    %cst = arith.constant dense<0.000000e+00> : vector<16x16xf32>
    %8 = tpu.matmul %6, %7, %cst {dimension_numbers = #tpu.dot_dimension_numbers<[1], [1], [0], [0], [0, 0, 1, 0], [], []>} : vector<16x32xf32>, vector<16x32xf32>, vector<16x16xf32> -> vector<16x16xf32>
    %c0_9 = arith.constant 0 : index
    %c0_10 = arith.constant 0 : index
    %9 = vector.load %arg5[%c0_9, %c0_10] : memref<1x16xf32, #tpu.memory_space<vmem>>, vector<1x16xf32>
    %10 = vector.broadcast %9 : vector<1x16xf32> to vector<16x16xf32>
    %11 = arith.addf %8, %10 : vector<16x16xf32>
    %c0_11 = arith.constant 0 : index
    %c0_12 = arith.constant 0 : index
    %12 = vector.load %arg6[%c0_11, %c0_12] : memref<16x16xf32, #tpu.memory_space<vmem>>, vector<16x16xf32>
    tpu.vector_store %arg6[%c0_11, %c0_12], %11 {strides = array<i32>} : memref<16x16xf32, #tpu.memory_space<vmem>>, vector<16x16xf32>,
    return
  }
}

</mosaic_0001>

<llo_original>
// kernel: tpu_custom_call.1
$region0: #{tpu_custom_call.1}
  #allocation0 [shape = 'u32[]', space=smem, size = 0x4, offset = 0x4, fixed_abs, tag = 'smem constant byte address 0x4 - core index']
  #allocation1 [shape = 'u32[144,128]{1,0:T(1,128)}', space=vmem, size = 0x12000, scoped, tag = 'internal scratch']
  %s0 = inlined_call_operand.hbm [shape: f32[16,16], index: 0, kind: input, shape index: {}]
  %s1 = inlined_call_operand.hbm [shape: f32[16,16], index: 1, kind: input, shape index: {}]
  %s2 = inlined_call_operand.hbm [shape: f32[16,16], index: 2, kind: input, shape index: {}]
  %s3 = inlined_call_operand.hbm [shape: f32[16,16], index: 3, kind: input, shape index: {}]
  %s4 = inlined_call_operand.hbm [shape: f32[16,32], index: 4, kind: input, shape index: {}]
  %s5 = inlined_call_operand.vmem [shape: f32[1,16], index: 5, kind: input, shape index: {}]
  %s6 = inlined_call_operand.hbm [shape: f32[16,16], index: 6, kind: output, shape index: {}]
  %s7 = sld [smem:[#allocation0]]
  $region54: #{tpu_custom_call.1} parent=0
    _
  %s9 = ssub.s32 1, %s7
  %s10 = scalar_select 0, %s9, %s7
  $region1: #{tpu_custom_call.1} parent=0
    #allocation2 [shape = 'u8[8192]{0}', space=vmem, size = 0x2000, scoped, tag = 'input window, operand 0, single buffered']
    #allocation3 [shape = 's32[1]{0}', space=sflag, size = 0x4, scoped, tag = 'scoped memory for tpu_custom_call.1']
    #allocation4 [shape = 's32[1]{0}', space=sflag, size = 0x4, scoped, tag = 'scoped memory for tpu_custom_call.1']
    #allocation5 [shape = 'u8[8192]{0}', space=vmem, size = 0x2000, scoped, tag = 'input window, operand 1, single buffered']
    #allocation6 [shape = 's32[1]{0}', space=sflag, size = 0x4, scoped, tag = 'scoped memory for tpu_custom_call.1']
    #allocation7 [shape = 'u8[8192]{0}', space=vmem, size = 0x2000, scoped, tag = 'input window, operand 2, single buffered']
    #allocation8 [shape = 'u8[8192]{0}', space=vmem, size = 0x2000, scoped, tag = 'input window, operand 3, single buffered']
    #allocation9 [shape = 's32[1]{0}', space=sflag, size = 0x4, scoped, tag = 'scoped memory for tpu_custom_call.1']
    #allocation10 [shape = 'u8[8192]{0}', space=vmem, size = 0x2000, scoped, tag = 'input window, operand 4, single buffered']
    #allocation11 [shape = 'u8[8192]{0}', space=vmem, size = 0x2000, scoped, tag = 'output window, operand 0, single buffered']
    %11 = vsyncpa [#allocation3], 0
    %12 = vsyncpa [#allocation6], 0
    %13 = vsyncpa [#allocation9], 0
    %14 = vsyncpa [#allocation4], 0
    // Predicated region
    $region2: #{tpu_custom_call.1} parent=1 // pred_check
      _
    $region3: #{tpu_custom_call.1} parent=1 // pred_check_branch
      %16 = sbr.rel (0) target = $region5
    $region4: #{tpu_custom_call.1} parent=1 // pred_region
      %s18 = ssub.s32 256, 256
      %19 = vsyncadd [#allocation3], %s18
      %s20 = sshll.u32 [#allocation2], 4
      %s21 = int_to_ptr.vmem [resolvable:$true] %s20
      %26 = dma.hbm_to_vmem [thread:$0]  %s0, 256, %s21, [#allocation3], 128, 128, 8
    $region5: #{tpu_custom_call.1} parent=1 // pred_fallthru
      _
    // Predicated region
    $region6: #{tpu_custom_call.1} parent=1 // pred_check
      _
    $region7: #{tpu_custom_call.1} parent=1 // pred_check_branch
      %28 = sbr.rel (0) target = $region9
    $region8: #{tpu_custom_call.1} parent=1 // pred_region
      %s30 = ssub.s32 256, 256
      %31 = vsyncadd [#allocation6], %s30
      %s32 = sshll.u32 [#allocation5], 4
      %s33 = int_to_ptr.vmem [resolvable:$true] %s32
      %38 = dma.hbm_to_vmem [thread:$0]  %s1, 256, %s33, [#allocation6], 128, 128, 8
    $region9: #{tpu_custom_call.1} parent=1 // pred_fallthru
      _
    // Predicated region
    $region10: #{tpu_custom_call.1} parent=1 // pred_check
      _
    $region11: #{tpu_custom_call.1} parent=1 // pred_check_branch
      %40 = sbr.rel (0) target = $region13
    $region12: #{tpu_custom_call.1} parent=1 // pred_region
      %s42 = ssub.s32 256, 256
      %43 = vsyncadd [#allocation6], %s42
      %s44 = sshll.u32 [#allocation7], 4
      %s45 = int_to_ptr.vmem [resolvable:$true] %s44
      %50 = dma.hbm_to_vmem [thread:$0]  %s2, 256, %s45, [#allocation6], 128, 128, 8
    $region13: #{tpu_custom_call.1} parent=1 // pred_fallthru
      _
    // Predicated region
    $region14: #{tpu_custom_call.1} parent=1 // pred_check
      _
    $region15: #{tpu_custom_call.1} parent=1 // pred_check_branch
      %52 = sbr.rel (0) target = $region17
    $region16: #{tpu_custom_call.1} parent=1 // pred_region
      %s54 = ssub.s32 256, 256
      %55 = vsyncadd [#allocation9], %s54
      %s56 = sshll.u32 [#allocation8], 4
      %s57 = int_to_ptr.vmem [resolvable:$true] %s56
      %62 = dma.hbm_to_vmem [thread:$0]  %s3, 256, %s57, [#allocation9], 128, 128, 8
    $region17: #{tpu_custom_call.1} parent=1 // pred_fallthru
      _
    // Predicated region
    $region18: #{tpu_custom_call.1} parent=1 // pred_check
      _
    $region19: #{tpu_custom_call.1} parent=1 // pred_check_branch
      %64 = sbr.rel (0) target = $region21
    $region20: #{tpu_custom_call.1} parent=1 // pred_region
      %s66 = ssub.s32 256, 256
      %67 = vsyncadd [#allocation9], %s66
      %s68 = sshll.u32 [#allocation10], 4
      %s69 = int_to_ptr.vmem [resolvable:$true] %s68
      %74 = dma.hbm_to_vmem [thread:$0]  %s4, 256, %s69, [#allocation9], 128, 128, 8
    $region21: #{tpu_custom_call.1} parent=1 // pred_fallthru
      _
    // Predicated region
    $region22: #{tpu_custom_call.1} parent=1 // pred_check
      _
    $region23: #{tpu_custom_call.1} parent=1 // pred_check_branch
      %76 = sbr.rel (0) target = $region25
    $region24: #{tpu_custom_call.1} parent=1 // pred_region
      _
    $region25: #{tpu_custom_call.1} parent=1 // pred_fallthru
      _
    // Predicated region
    $region26: #{tpu_custom_call.1} parent=1 // pred_check
      _
    $region27: #{tpu_custom_call.1} parent=1 // pred_check_branch
      %78 = sbr.rel (0) target = $region29
    $region28: #{tpu_custom_call.1} parent=1 // pred_region
      %79 = dma.done [#allocation3], 256
    $region29: #{tpu_custom_call.1} parent=1 // pred_fallthru
      _
    // Predicated region
    $region30: #{tpu_custom_call.1} parent=1 // pred_check
      _
    $region31: #{tpu_custom_call.1} parent=1 // pred_check_branch
      %81 = sbr.rel (0) target = $region33
    $region32: #{tpu_custom_call.1} parent=1 // pred_region
      %82 = dma.done [#allocation6], 256
    $region33: #{tpu_custom_call.1} parent=1 // pred_fallthru
      _
    // Predicated region
    $region34: #{tpu_custom_call.1} parent=1 // pred_check
      _
    $region35: #{tpu_custom_call.1} parent=1 // pred_check_branch
      %84 = sbr.rel (0) target = $region37
    $region36: #{tpu_custom_call.1} parent=1 // pred_region
      %85 = dma.done [#allocation6], 256
    $region37: #{tpu_custom_call.1} parent=1 // pred_fallthru
      _
    // Predicated region
    $region38: #{tpu_custom_call.1} parent=1 // pred_check
      _
    $region39: #{tpu_custom_call.1} parent=1 // pred_check_branch
      %87 = sbr.rel (0) target = $region41
    $region40: #{tpu_custom_call.1} parent=1 // pred_region
      %88 = dma.done [#allocation9], 256
    $region41: #{tpu_custom_call.1} parent=1 // pred_fallthru
      _
    // Predicated region
    $region42: #{tpu_custom_call.1} parent=1 // pred_check
      _
    $region43: #{tpu_custom_call.1} parent=1 // pred_check_branch
      %90 = sbr.rel (0) target = $region45
    $region44: #{tpu_custom_call.1} parent=1 // pred_region
      %91 = dma.done [#allocation9], 256
    $region45: #{tpu_custom_call.1} parent=1 // pred_fallthru
      _
    %v92 = vld [vmem:[#allocation2] sm:$0xff]
    %v93 = vld [vmem:[#allocation2 + $0x8] sm:$0xff]
    %v94 = vld [vmem:[#allocation5] sm:$0xff]
    %v95 = vld [vmem:[#allocation5 + $0x8] sm:$0xff]
    %v96 = vadd.f32 %v92, %v94
    %v97 = vadd.f32 %v93, %v95
    %v98 = vld [vmem:[#allocation8] sm:$0xff]
    %v99 = vld [vmem:[#allocation8 + $0x8] sm:$0xff]
    %v100 = vadd.f32 %v96, %v98
    %v101 = vadd.f32 %v97, %v99
    %v102 = vld [vmem:[#allocation7] sm:$0xff]
    %v103 = vld [vmem:[#allocation7 + $0x8] sm:$0xff]
    %106 = vrot.lane.b32.xlu0 %v102, 16
    %v107 = vpop.permute.xlu0 %106
    %108 = vrot.lane.b32.xlu0 %v103, 16
    %v109 = vpop.permute.xlu0 %108
    %vm112 = vcmask 130048
    %v113 = vsel %vm112, %v100, %v107
    %v114 = vsel %vm112, %v101, %v109
    %v115 = vld [vmem:[#allocation10] sm:$0xff]
    %v116 = vld [vmem:[#allocation10 + $0x8] sm:$0xff]
    %v117 = vld [vmem:[%s5] sm:$0x1]
    %v119 = vlaneseq
    %v120 = vshrl.u32 %v119, 7
    %v121 = vsub.s32 0, %v120
    %v122 = vrot.slane %v117, %v121
    %vm124 = vcmask 261120
    %v126 = vsel %vm124, %v113, 0
    %v129 = vsel %vm124, %v114, 0
    %v132 = vsel %vm124, %v115, 0
    %v135 = vsel %vm124, %v116, 0
    %137 = vmatprep.subr.mxu0 0.0
    %138 = vmatpush1.xpose.msra.mxu0 0.0
    %139 = vmatprep.subr.mxu0 0.0
    %140 = vmatpush1.xpose.msra.mxu0 0.0
    %141 = vmatprep.subr.mxu0 0.0
    %142 = vmatpush1.xpose.msra.mxu0 0.0
    %143 = vmatprep.subr.mxu0 0.0
    %144 = vmatpush1.xpose.msra.mxu0 0.0
    %145 = vmatprep.subr.mxu0 0.0
    %146 = vmatpush1.xpose.msra.mxu0 0.0
    %147 = vmatprep.subr.mxu0 0.0
    %148 = vmatpush1.xpose.msra.mxu0 0.0
    %149 = vmatprep.subr.mxu0 0.0
    %150 = vmatpush1.xpose.msra.mxu0 0.0
    %151 = vmatprep.subr.mxu0 0.0
    %152 = vmatpush1.xpose.msra.mxu0 0.0
    %153 = vmatprep.subr.mxu0 0.0
    %154 = vmatpush1.xpose.msra.mxu0 0.0
    %155 = vmatprep.subr.mxu0 0.0
    %156 = vmatpush1.xpose.msra.mxu0 0.0
    %157 = vmatprep.subr.mxu0 0.0
    %158 = vmatpush1.xpose.msra.mxu0 0.0
    %159 = vmatprep.subr.mxu0 0.0
    %160 = vmatpush1.xpose.msra.mxu0 0.0
    %161 = vmatprep.subr.mxu0 0.0
    %162 = vmatpush1.xpose.msra.mxu0 0.0
    %163 = vmatprep.subr.mxu0 0.0
    %164 = vmatpush1.xpose.msra.mxu0 0.0
    %165 = vmatprep.subr.mxu0 0.0
    %166 = vmatpush1.xpose.msra.mxu0 %v135
    %167 = vmatprep.subr.mxu0 0.0
    %168 = vmatpush1.xpose.msra.mxu0 %v132
    %169 = vmatprep.subr.mxu0 0.0
    %170 = vmatpush2.xpose.msra.mxu0 0.0
    %171 = vmatprep.subr.mxu0 0.0
    %172 = vmatpush2.xpose.msra.mxu0 0.0
    %173 = vmatprep.subr.mxu0 0.0
    %174 = vmatpush2.xpose.msra.mxu0 0.0
    %175 = vmatprep.subr.mxu0 0.0
    %176 = vmatpush2.xpose.msra.mxu0 0.0
    %177 = vmatprep.subr.mxu0 0.0
    %178 = vmatpush2.xpose.msra.mxu0 0.0
    %179 = vmatprep.subr.mxu0 0.0
    %180 = vmatpush2.xpose.msra.mxu0 0.0
    %181 = vmatprep.subr.mxu0 0.0
    %182 = vmatpush2.xpose.msra.mxu0 0.0
    %183 = vmatprep.subr.mxu0 0.0
    %184 = vmatpush2.xpose.msra.mxu0 0.0
    %185 = vmatprep.subr.mxu0 0.0
    %186 = vmatpush2.xpose.msra.mxu0 0.0
    %187 = vmatprep.subr.mxu0 0.0
    %188 = vmatpush2.xpose.msra.mxu0 0.0
    %189 = vmatprep.subr.mxu0 0.0
    %190 = vmatpush2.xpose.msra.mxu0 0.0
    %191 = vmatprep.subr.mxu0 0.0
    %192 = vmatpush2.xpose.msra.mxu0 0.0
    %193 = vmatprep.subr.mxu0 0.0
    %194 = vmatpush2.xpose.msra.mxu0 0.0
    %195 = vmatprep.subr.mxu0 0.0
    %196 = vmatpush2.xpose.msra.mxu0 0.0
    %197 = vmatprep.subr.mxu0 0.0
    %198 = vmatpush2.xpose.msra.mxu0 0.0
    %199 = vmatprep.subr.mxu0 0.0
    %200 = vmatpush2.xpose.msra.mxu0 0.0
    %201 = vmatprep.mubr.f32.mxu0 0.0
    %202 = vmatmul.mubr.f32.gmra.mxu0 %v126
    %v203 = vpop.f32.mrf.mxu0
    %v204 = vadd.f32 %v122, %v203
    %v205 = vpop.f32.mrf.mxu0
    %206 = vmatprep.mubr.f32.mxu0 0.0
    %207 = vmatmul.mubr.f32.gmra.mxu0 %v129
    %v208 = vpop.f32.mrf.mxu0
    %v209 = vadd.f32 %v122, %v208
    %v210 = vpop.f32.mrf.mxu0
    %211 = vdwg.mxu0
    %212 = vst.msk [vmem:[#allocation11] sm:$0xff] %vm112, %v204
    %213 = vst.msk [vmem:[#allocation11 + $0x8] sm:$0xff] %vm112, %v209
    // Predicated region
    $region46: #{tpu_custom_call.1} parent=1 // pred_check
      _
    $region47: #{tpu_custom_call.1} parent=1 // pred_check_branch
      %215 = sbr.rel (0) target = $region49
    $region48: #{tpu_custom_call.1} parent=1 // pred_region
      %s217 = ssub.s32 256, 256
      %218 = vsyncadd [#allocation4], %s217
      %s219 = sshll.u32 [#allocation11], 4
      %s220 = int_to_ptr.vmem [resolvable:$true] %s219
      %225 = dma.vmem_to_hbm [thread:$0]  %s220, 256, %s6, [#allocation4], 128, 128, 8
    $region49: #{tpu_custom_call.1} parent=1 // pred_fallthru
      _
    // Predicated region
    $region50: #{tpu_custom_call.1} parent=1 // pred_check
      _
    $region51: #{tpu_custom_call.1} parent=1 // pred_check_branch
      %227 = sbr.rel (0) target = $region53
    $region52: #{tpu_custom_call.1} parent=1 // pred_region
      %228 = dma.done [#allocation4], 256
    $region53: #{tpu_custom_call.1} parent=1 // pred_fallthru
      _
    %229 = vsyncpa [#allocation3], 1
    %230 = vsyncpa [#allocation6], 1
    %231 = vsyncpa [#allocation9], 1
    %232 = vsyncpa [#allocation4], 1

</llo_original>
